<compile_context>
chip_gen: v5e
topology: v5e:2x2
jax: 0.10.0
libtpu: 0.0.40
codegen_flags: <defaults>
</compile_context>

<pallas_src>
import math
import functools

import jax
import jax.numpy as jnp
from jax.experimental import pallas as pl
from jax.experimental.pallas import tpu as pltpu


NEG_SLOPE = 0.01  # F.leaky_relu default negative_slope


def _leaky_relu(v):
    # Equivalent to leaky_relu for 0 <= slope <= 1; one VPU mul + max.
    return jnp.maximum(v, NEG_SLOPE * v)


def _build_qnet_kernel(num_hidden: int, state_dim: int, action_dim: int):
    """Fused MLP kernel, feature-major (features on sublanes, batch on lanes).

    Ref order (per grid step):
      x_in (S+A, TB) f32                                   [state rows, then action rows]
      w_in (H0, S) f32, b_in (H0, 1) f32
      [hidden 0: w_x (H1, H0), w_a (H1, A), b (H1, 1)]     all f32
      [hidden i>0: w (H_{i+1}, H_i), b (H_{i+1}, 1)] ...
      w_out (H_last, 1) f32, b_out (1,) f32 in SMEM,
      out (1, TB) f32                                      [lane-dense, batch on lanes]
    """

    def kernel(*refs):
        i = 0
        xin_ref = refs[i]; i += 1
        w_in = refs[i]; b_in = refs[i + 1]; i += 2

        st = xin_ref[:state_dim, :]                      # (S, TB)
        act = xin_ref[state_dim:, :] if num_hidden > 0 else None  # (A, TB)

        # input layer + activation: (H0, S) @ (S, TB) -> (H0, TB), batch on MXU's N
        x = jnp.dot(w_in[...], st, preferred_element_type=jnp.float32) + b_in[...]
        x = _leaky_relu(x)

        # hidden layers
        for layer in range(num_hidden):
            if layer == 0:
                w_x = refs[i]; w_a = refs[i + 1]; b = refs[i + 2]; i += 3
                # W @ cat([x, action], dim=0)  ==  W_x @ x + W_a @ action   (exact)
                x = (jnp.dot(w_x[...], x, preferred_element_type=jnp.float32)
                     + jnp.dot(w_a[...], act, preferred_element_type=jnp.float32)
                     + b[...])
            else:
                w = refs[i]; b = refs[i + 1]; i += 2
                x = jnp.dot(w[...], x, preferred_element_type=jnp.float32) + b[...]
            x = _leaky_relu(x)

        # output layer (width 1, no activation): VPU multiply + sublane reduce lands
        # directly in the lane-dense (1, TB) output block — no relayout, no masked
        # width-1 MXU stores.
        w_out = refs[i]; b_out = refs[i + 1]; out_ref = refs[i + 2]
        q = jnp.sum(x * w_out[...], axis=0, keepdims=True) + b_out[0]   # (1, TB)
        out_ref[...] = q.astype(out_ref.dtype)

    return kernel


def init_params(key, input_dim, output_dim, hidden_dims):
    """Parameter init mirroring the PyTorch module's reset_parameters():
    input/hidden weights uniform(-1/sqrt(out_features), ...) (hidden_init uses
    weight.size(0) == out_features), output weights uniform(-0.003, 0.003),
    biases keep nn.Linear default uniform(-1/sqrt(in_features), ...).
    Weights are stored (in_features, out_features) for the x @ W reference."""
    params = {}

    def linear(key, in_dim, out_dim, w_lim):
        kw, kb = jax.random.split(key)
        w = jax.random.uniform(kw, (in_dim, out_dim), jnp.float32, -w_lim, w_lim)
        b_lim = 1.0 / math.sqrt(in_dim)
        b = jax.random.uniform(kb, (1, out_dim), jnp.float32, -b_lim, b_lim)
        return w, b

    keys = jax.random.split(key, len(hidden_dims) + 2)

    lim = 1.0 / math.sqrt(hidden_dims[0])
    params["w_in"], params["b_in"] = linear(keys[0], input_dim, hidden_dims[0], lim)

    hidden = []
    for i in range(len(hidden_dims) - 1):
        in_dim = hidden_dims[i] + (output_dim if i == 0 else 0)
        out_dim = hidden_dims[i + 1]
        lim = 1.0 / math.sqrt(out_dim)
        hidden.append(linear(keys[1 + i], in_dim, out_dim, lim))
    params["hidden"] = hidden

    params["w_out"], params["b_out"] = linear(keys[-1], hidden_dims[-1], 1, 0.003)
    return params


def flatten_params(params, hidden_dims):
    """Kernel argument order, feature-major: weights transposed to (out, in), biases
    to (out, 1).  Layer 0's weight is split into x-part / action-part.  All f32."""
    f32 = jnp.float32
    flat = [params["w_in"].T.astype(f32),            # (H0, S)
            params["b_in"].T.astype(f32)]            # (H0, 1)
    for i, (w, b) in enumerate(params["hidden"]):
        if i == 0:
            h0 = hidden_dims[0]
            flat.extend([w[:h0, :].T.astype(f32),    # (H1, H0)
                         w[h0:, :].T.astype(f32),    # (H1, A)
                         b.T.astype(f32)])           # (H1, 1)
        else:
            flat.extend([w.T.astype(f32), b.T.astype(f32)])
    flat.append(params["w_out"].astype(f32))                 # (H_last, 1) column
    flat.append(params["b_out"].reshape(-1).astype(f32))     # (1,) -> SMEM
    return flat


def _choose_batch_tile(batch):
    """Batch tile (lane axis).  Small batches: one lane-aligned tile.  Large batches:
    1024-2048-row tiles (multiple of 256 to fill the v6e/v7x 256-wide MXU result;
    also a multiple of 128 for v5e), capped so the grid has >= 2 steps — this lets
    the "parallel" batch axis shard across v7x's two TensorCores."""
    TB_MAX = 2048
    b128 = ((batch + 127) // 128) * 128
    if b128 <= 512:
        tb = b128                                        # single small tile
    else:
        b256 = ((batch + 255) // 256) * 256
        half = ((b256 // 2 + 255) // 256) * 256          # >= 2 grid steps
        tb = min(TB_MAX, half)
    b_pad = ((batch + tb - 1) // tb) * tb
    return tb, b_pad


@functools.partial(jax.jit, static_argnames=("num_hidden",))
def fc_q_forward(state, action, flat_args, num_hidden):
    """Fused Q-network forward pass in a single batch-gridded Pallas kernel."""
    expected = 4 + (3 + 2 * (num_hidden - 1) if num_hidden > 0 else 0)
    assert len(flat_args) == expected, (len(flat_args), expected)

    batch, input_dim = state.shape
    action_dim = action.shape[1]
    feat = input_dim + action_dim
    tb, b_pad = _choose_batch_tile(batch)
    grid = (b_pad // tb,)

    # Single streamed input: cat([state, action], dim=1), padded on batch, then
    # transposed to feature-major (S+A, B_pad) so the batch lands on lanes.
    xin = jnp.concatenate([state, action], axis=1).astype(jnp.float32)   # (B, S+A)
    if b_pad != batch:
        xin = jnp.pad(xin, ((0, b_pad - batch), (0, 0)))
    xin = xin.T                                                          # (S+A, B_pad)

    kernel = _build_qnet_kernel(num_hidden, input_dim, action_dim)

    in_specs = [pl.BlockSpec((feat, tb), lambda i: (0, i))]
    # Weights/biases: full-block, constant index_map -> VMEM-resident across tiles.
    for a in flat_args[:-1]:
        in_specs.append(pl.BlockSpec(a.shape, lambda i: (0, 0)))
    in_specs.append(pl.BlockSpec(memory_space=pltpu.SMEM))   # b_out scalar

    # Lane-dense output: batch on lanes, (1, TB) blocks.
    out_specs = pl.BlockSpec((1, tb), lambda i: (0, i))
    out_shape = jax.ShapeDtypeStruct((1, b_pad), jnp.float32)

    # Advisory cost estimate so XLA can overlap this call with surrounding work.
    flops = 2 * b_pad * sum(int(a.shape[0]) * int(a.shape[1])
                            for a in flat_args if a.ndim == 2)
    bytes_accessed = (int(xin.size) * 4
                      + sum(int(a.size) * a.dtype.itemsize for a in flat_args)
                      + b_pad * 4)
    cost = pl.CostEstimate(flops=flops, transcendentals=0,
                           bytes_accessed=bytes_accessed)

    out = pl.pallas_call(
        kernel,
        grid=grid,
        in_specs=in_specs,
        out_specs=out_specs,
        out_shape=out_shape,
        compiler_params=pltpu.CompilerParams(
            dimension_semantics=("parallel",),      # megacore sharding on v7x
            vmem_limit_bytes=32 * 1024 * 1024,      # tiles use <1 MiB; safe everywhere
        ),
        cost_estimate=cost,
    )(xin, *flat_args)

    return out[0, :batch].reshape(batch, 1)


def reference_forward(state, action, params):
    """Pure-JAX f32 reference matching the PyTorch forward exactly."""
    x = _leaky_relu(state @ params["w_in"] + params["b_in"])
    for i, (w, b) in enumerate(params["hidden"]):
        if i == 0:
            x = jnp.concatenate([x, action], axis=1)
        x = _leaky_relu(x @ w + b)
    return x @ params["w_out"] + params["b_out"]


if __name__ == "__main__":
    # Small shapes consistent with the module.
    batch = 8
    input_dim = 16      # state dimension
    output_dim = 4      # action dimension
    hidden_dims = (32, 32)

    key = jax.random.PRNGKey(0)
    (k_state, k_action, k_params,
     k_state2, k_action2, k_state3, k_action3) = jax.random.split(key, 7)

    state = jax.random.normal(k_state, (batch, input_dim), jnp.float32)
    action = jax.random.normal(k_action, (batch, output_dim), jnp.float32)

    params = init_params(k_params, input_dim, output_dim, hidden_dims)
    flat = flatten_params(params, hidden_dims)
    num_hidden = len(params["hidden"])

    out = fc_q_forward(state, action, flat, num_hidden=num_hidden)
    out = jax.block_until_ready(out)
    ref = reference_forward(state, action, params)
    assert out.shape == (batch, 1)
    # All-f32 path (MXU f32 passes) -> tight agreement with the f32 reference.
    assert jnp.allclose(out, ref, atol=1e-2, rtol=1e-2), (out, ref)

    # Second check exercises the batch grid (>1 tile) and the padding path.
    batch2 = 384
    state2 = jax.random.normal(k_state2, (batch2, input_dim), jnp.float32)
    action2 = jax.random.normal(k_action2, (batch2, output_dim), jnp.float32)
    out2 = jax.block_until_ready(
        fc_q_forward(state2, action2, flat, num_hidden=num_hidden))
    ref2 = reference_forward(state2, action2, params)
    assert out2.shape == (batch2, 1)
    assert jnp.allclose(out2, ref2, atol=1e-2, rtol=1e-2)

    # Third check exercises the large-tile (TB > 512) branch with padding.
    batch3 = 2177
    state3 = jax.random.normal(k_state3, (batch3, input_dim), jnp.float32)
    action3 = jax.random.normal(k_action3, (batch3, output_dim), jnp.float32)
    out3 = jax.block_until_ready(
        fc_q_forward(state3, action3, flat, num_hidden=num_hidden))
    ref3 = reference_forward(state3, action3, params)
    assert out3.shape == (batch3, 1)
    assert jnp.allclose(out3, ref3, atol=1e-2, rtol=1e-2)

    print("KERNEL_OK")
</pallas_src>

<mosaic_0001>
module attributes {stable_mosaic.version = 11 : i64} {
  func.func @kernel(%arg0: i32, %arg1: memref<20x128xf32, #tpu.memory_space<vmem>>, %arg2: memref<32x16xf32, #tpu.memory_space<vmem>>, %arg3: memref<32x1xf32, #tpu.memory_space<vmem>>, %arg4: memref<32x32xf32, #tpu.memory_space<vmem>>, %arg5: memref<32x4xf32, #tpu.memory_space<vmem>>, %arg6: memref<32x1xf32, #tpu.memory_space<vmem>>, %arg7: memref<32x1xf32, #tpu.memory_space<vmem>>, %arg8: memref<1xf32, #tpu.memory_space<smem>>, %arg9: memref<1x128xf32, #tpu.memory_space<vmem>>) attributes {dimension_semantics = [#tpu.dimension_semantics<parallel>], iteration_bounds = array<i64: 1>, scalar_prefetch = 0 : i64, scratch_operands = 0 : i64, tpu.core_type = #tpu.core_type<tc>, window_params = [{transform_indices = @transform_0, window_bounds = array<i64: 20, 128>}, {pipeline_mode = #tpu.pipeline_mode<synchronous>, transform_indices = @transform_1, window_bounds = array<i64: 32, 16>}, {pipeline_mode = #tpu.pipeline_mode<synchronous>, transform_indices = @transform_2, window_bounds = array<i64: 32, 1>}, {pipeline_mode = #tpu.pipeline_mode<synchronous>, transform_indices = @transform_3, window_bounds = array<i64: 32, 32>}, {pipeline_mode = #tpu.pipeline_mode<synchronous>, transform_indices = @transform_4, window_bounds = array<i64: 32, 4>}, {pipeline_mode = #tpu.pipeline_mode<synchronous>, transform_indices = @transform_5, window_bounds = array<i64: 32, 1>}, {pipeline_mode = #tpu.pipeline_mode<synchronous>, transform_indices = @transform_6, window_bounds = array<i64: 32, 1>}, {transform_indices = @transform_7, window_bounds = array<i64: 1>}, {transform_indices = @transform_8, window_bounds = array<i64: 1, 128>}]} {
    %c0 = arith.constant 0 : index
    %c0_0 = arith.constant 0 : index
    %0 = vector.load %arg1[%c0, %c0_0] : memref<20x128xf32, #tpu.memory_space<vmem>>, vector<16x128xf32>
    %c16 = arith.constant 16 : index
    %c0_1 = arith.constant 0 : index
    %1 = vector.load %arg1[%c16, %c0_1] : memref<20x128xf32, #tpu.memory_space<vmem>>, vector<4x128xf32>
    %c0_2 = arith.constant 0 : index
    %c0_3 = arith.constant 0 : index
    %2 = vector.load %arg2[%c0_2, %c0_3] : memref<32x16xf32, #tpu.memory_space<vmem>>, vector<32x16xf32>
    %cst = arith.constant dense<0.000000e+00> : vector<32x128xf32>
    %3 = tpu.matmul %2, %0, %cst {dimension_numbers = #tpu.dot_dimension_numbers<[1], [0], [0], [1], [0, 0, 1, 1], [], []>} : vector<32x16xf32>, vector<16x128xf32>, vector<32x128xf32> -> vector<32x128xf32>
    %c0_4 = arith.constant 0 : index
    %c0_5 = arith.constant 0 : index
    %4 = vector.load %arg3[%c0_4, %c0_5] : memref<32x1xf32, #tpu.memory_space<vmem>>, vector<32x1xf32>
    %5 = vector.broadcast %4 : vector<32x1xf32> to vector<32x128xf32>
    %6 = arith.addf %3, %5 : vector<32x128xf32>
    %cst_6 = arith.constant 0.00999999977 : f32
    %7 = vector.broadcast %cst_6 : f32 to vector<32x128xf32>
    %8 = arith.mulf %7, %6 : vector<32x128xf32>
    %9 = arith.maximumf %6, %8 : vector<32x128xf32>
    %c0_7 = arith.constant 0 : index
    %c0_8 = arith.constant 0 : index
    %10 = vector.load %arg4[%c0_7, %c0_8] : memref<32x32xf32, #tpu.memory_space<vmem>>, vector<32x32xf32>
    %cst_9 = arith.constant dense<0.000000e+00> : vector<32x128xf32>
    %11 = tpu.matmul %10, %9, %cst_9 {dimension_numbers = #tpu.dot_dimension_numbers<[1], [0], [0], [1], [0, 0, 1, 1], [], []>} : vector<32x32xf32>, vector<32x128xf32>, vector<32x128xf32> -> vector<32x128xf32>
    %c0_10 = arith.constant 0 : index
    %c0_11 = arith.constant 0 : index
    %12 = vector.load %arg5[%c0_10, %c0_11] : memref<32x4xf32, #tpu.memory_space<vmem>>, vector<32x4xf32>
    %cst_12 = arith.constant dense<0.000000e+00> : vector<32x128xf32>
    %13 = tpu.matmul %12, %1, %cst_12 {dimension_numbers = #tpu.dot_dimension_numbers<[1], [0], [0], [1], [0, 0, 1, 1], [], []>} : vector<32x4xf32>, vector<4x128xf32>, vector<32x128xf32> -> vector<32x128xf32>
    %14 = arith.addf %11, %13 : vector<32x128xf32>
    %c0_13 = arith.constant 0 : index
    %c0_14 = arith.constant 0 : index
    %15 = vector.load %arg6[%c0_13, %c0_14] : memref<32x1xf32, #tpu.memory_space<vmem>>, vector<32x1xf32>
    %16 = vector.broadcast %15 : vector<32x1xf32> to vector<32x128xf32>
    %17 = arith.addf %14, %16 : vector<32x128xf32>
    %cst_15 = arith.constant 0.00999999977 : f32
    %18 = vector.broadcast %cst_15 : f32 to vector<32x128xf32>
    %19 = arith.mulf %18, %17 : vector<32x128xf32>
    %20 = arith.maximumf %17, %19 : vector<32x128xf32>
    %c0_16 = arith.constant 0 : index
    %c0_17 = arith.constant 0 : index
    %21 = vector.load %arg7[%c0_16, %c0_17] : memref<32x1xf32, #tpu.memory_space<vmem>>, vector<32x1xf32>
    %22 = vector.broadcast %21 : vector<32x1xf32> to vector<32x128xf32>
    %23 = arith.mulf %20, %22 : vector<32x128xf32>
    %cst_18 = arith.constant dense<0.000000e+00> : vector<128xf32>
    %24 = vector.multi_reduction <add>, %23, %cst_18 [0] : vector<32x128xf32> to vector<128xf32>
    %25 = vector.shape_cast %24 : vector<128xf32> to vector<1x128xf32>
    %c0_19 = arith.constant 0 : index
    %26 = memref.load %arg8[%c0_19] : memref<1xf32, #tpu.memory_space<smem>>
    %27 = vector.broadcast %26 : f32 to vector<1x128xf32>
    %28 = arith.addf %25, %27 : vector<1x128xf32>
    %c0_20 = arith.constant 0 : index
    %c0_21 = arith.constant 0 : index
    %29 = vector.load %arg9[%c0_20, %c0_21] : memref<1x128xf32, #tpu.memory_space<vmem>>, vector<1x128xf32>
    tpu.vector_store %arg9[%c0_20, %c0_21], %28 {strides = array<i32>} : memref<1x128xf32, #tpu.memory_space<vmem>>, vector<1x128xf32>,
    return
  }
  func.func @transform_0(%arg0: i32) -> (i32, i32) {
    %c0_i32 = arith.constant 0 : i32
    %c0_i32_0 = arith.constant 0 : i32
    return %c0_i32, %arg0 : i32, i32
  }
  func.func @transform_1(%arg0: i32) -> (i32, i32) {
    %c0_i32 = arith.constant 0 : i32
    %c0_i32_0 = arith.constant 0 : i32
    %c0_i32_1 = arith.constant 0 : i32
    return %c0_i32, %c0_i32_0 : i32, i32
  }
  func.func @transform_2(%arg0: i32) -> (i32, i32) {
    %c0_i32 = arith.constant 0 : i32
    %c0_i32_0 = arith.constant 0 : i32
    %c0_i32_1 = arith.constant 0 : i32
    return %c0_i32, %c0_i32_0 : i32, i32
  }
  func.func @transform_3(%arg0: i32) -> (i32, i32) {
    %c0_i32 = arith.constant 0 : i32
    %c0_i32_0 = arith.constant 0 : i32
    %c0_i32_1 = arith.constant 0 : i32
    return %c0_i32, %c0_i32_0 : i32, i32
  }
  func.func @transform_4(%arg0: i32) -> (i32, i32) {
    %c0_i32 = arith.constant 0 : i32
    %c0_i32_0 = arith.constant 0 : i32
    %c0_i32_1 = arith.constant 0 : i32
    return %c0_i32, %c0_i32_0 : i32, i32
  }
  func.func @transform_5(%arg0: i32) -> (i32, i32) {
    %c0_i32 = arith.constant 0 : i32
    %c0_i32_0 = arith.constant 0 : i32
    %c0_i32_1 = arith.constant 0 : i32
    return %c0_i32, %c0_i32_0 : i32, i32
  }
  func.func @transform_6(%arg0: i32) -> (i32, i32) {
    %c0_i32 = arith.constant 0 : i32
    %c0_i32_0 = arith.constant 0 : i32
    %c0_i32_1 = arith.constant 0 : i32
    return %c0_i32, %c0_i32_0 : i32, i32
  }
  func.func @transform_7(%arg0: i32) -> i32 {
    %c0_i32 = arith.constant 0 : i32
    %c0_i32_0 = arith.constant 0 : i32
    return %c0_i32 : i32
  }
  func.func @transform_8(%arg0: i32) -> (i32, i32) {
    %c0_i32 = arith.constant 0 : i32
    %c0_i32_0 = arith.constant 0 : i32
    return %c0_i32, %arg0 : i32, i32
  }
}

</mosaic_0001>

<llo_original>
// kernel: fc_q_forward.1
$region0: #{fc_q_forward.1}
  #allocation0 [shape = 'u32[]', space=smem, size = 0x4, offset = 0x4, fixed_abs, tag = 'smem constant byte address 0x4 - core index']
  #allocation1 [shape = 'u32[72,128]{1,0:T(1,128)}', space=vmem, size = 0x9000, scoped, tag = 'internal scratch']
  #allocation2 [shape = 'f32[1]{0:T(128)S(6)}', space=smem, size = 0x200, scoped, tag = 'scoped memory for fc_q_forward.1']
  %s0 = inlined_call_operand.vmem [shape: f32[20,128], index: 0, kind: input, shape index: {}]
  %s1 = inlined_call_operand.vmem [shape: f32[32,16], index: 1, kind: input, shape index: {}]
  %s2 = inlined_call_operand.vmem [shape: f32[32,1], index: 2, kind: input, shape index: {}]
  %s3 = inlined_call_operand.vmem [shape: f32[32,32], index: 3, kind: input, shape index: {}]
  %s4 = inlined_call_operand.vmem [shape: f32[32,4], index: 4, kind: input, shape index: {}]
  %s5 = inlined_call_operand.vmem [shape: f32[32,1], index: 5, kind: input, shape index: {}]
  %s6 = inlined_call_operand.vmem [shape: f32[32,1], index: 6, kind: input, shape index: {}]
  %s7 = inlined_call_operand.<no memory space> [shape: f32[1], index: 7, kind: input, shape index: {}]
  %s8 = inlined_call_operand.vmem [shape: f32[1,128], index: 8, kind: output, shape index: {}]
  %s9 = sld [smem:[#allocation0]]
  $region42: #{fc_q_forward.1} parent=0
    _
  %s11 = ssub.s32 1, %s9
  %s12 = scalar_select 0, %s11, %s9
  %13 = sst [smem:[#allocation2]] %s7
  // Predicated region
  $region2: #{fc_q_forward.1} parent=0 // pred_check
    _
  $region3: #{fc_q_forward.1} parent=0 // pred_check_branch
    %15 = sbr.rel (0) target = $region5
  $region4: #{fc_q_forward.1} parent=0 // pred_region
    _
  $region5: #{fc_q_forward.1} parent=0 // pred_fallthru
    _
  // Predicated region
  $region6: #{fc_q_forward.1} parent=0 // pred_check
    _
  $region7: #{fc_q_forward.1} parent=0 // pred_check_branch
    %17 = sbr.rel (0) target = $region9
  $region8: #{fc_q_forward.1} parent=0 // pred_region
    _
  $region9: #{fc_q_forward.1} parent=0 // pred_fallthru
    _
  // Predicated region
  $region10: #{fc_q_forward.1} parent=0 // pred_check
    _
  $region11: #{fc_q_forward.1} parent=0 // pred_check_branch
    %19 = sbr.rel (0) target = $region13
  $region12: #{fc_q_forward.1} parent=0 // pred_region
    _
  $region13: #{fc_q_forward.1} parent=0 // pred_fallthru
    _
  // Predicated region
  $region14: #{fc_q_forward.1} parent=0 // pred_check
    _
  $region15: #{fc_q_forward.1} parent=0 // pred_check_branch
    %21 = sbr.rel (0) target = $region17
  $region16: #{fc_q_forward.1} parent=0 // pred_region
    _
  $region17: #{fc_q_forward.1} parent=0 // pred_fallthru
    _
  // Predicated region
  $region18: #{fc_q_forward.1} parent=0 // pred_check
    _
  $region19: #{fc_q_forward.1} parent=0 // pred_check_branch
    %23 = sbr.rel (0) target = $region21
  $region20: #{fc_q_forward.1} parent=0 // pred_region
    _
  $region21: #{fc_q_forward.1} parent=0 // pred_fallthru
    _
  // Predicated region
  $region22: #{fc_q_forward.1} parent=0 // pred_check
    _
  $region23: #{fc_q_forward.1} parent=0 // pred_check_branch
    %25 = sbr.rel (0) target = $region25
  $region24: #{fc_q_forward.1} parent=0 // pred_region
    _
  $region25: #{fc_q_forward.1} parent=0 // pred_fallthru
    _
  // Predicated region
  $region26: #{fc_q_forward.1} parent=0 // pred_check
    _
  $region27: #{fc_q_forward.1} parent=0 // pred_check_branch
    %27 = sbr.rel (0) target = $region29
  $region28: #{fc_q_forward.1} parent=0 // pred_region
    _
  $region29: #{fc_q_forward.1} parent=0 // pred_fallthru
    _
  // Predicated region
  $region30: #{fc_q_forward.1} parent=0 // pred_check
    _
  $region31: #{fc_q_forward.1} parent=0 // pred_check_branch
    %29 = sbr.rel (0) target = $region33
  $region32: #{fc_q_forward.1} parent=0 // pred_region
    _
  $region33: #{fc_q_forward.1} parent=0 // pred_fallthru
    _
  %v30 = vld [vmem:[%s0] sm:$0xff]
  %v31 = vld [vmem:[%s0 + $0x8] sm:$0xff]
  %v32 = vld [vmem:[%s0 + $0x10] sm:$0xf]
  %v33 = vld [vmem:[%s1] sm:$0xff]
  %v34 = vld [vmem:[%s1 + $0x8] sm:$0xff]
  %v35 = vld [vmem:[%s1 + $0x10] sm:$0xff]
  %v36 = vld [vmem:[%s1 + $0x18] sm:$0xff]
  %v37 = vld [vmem:[%s2] sm:$0xff]
  %v38 = vld [vmem:[%s2 + $0x8] sm:$0xff]
  %v39 = vld [vmem:[%s2 + $0x10] sm:$0xff]
  %v40 = vld [vmem:[%s2 + $0x18] sm:$0xff]
  %42 = vset.pattern.permute.xlu0 0
  %43 = vperm.xlu0 %42, %v37
  %v44 = vpop.permute.xlu0 %43
  %47 = vset.pattern.permute.xlu0 0
  %48 = vperm.xlu0 %47, %v38
  %v49 = vpop.permute.xlu0 %48
  %52 = vset.pattern.permute.xlu0 0
  %53 = vperm.xlu0 %52, %v39
  %v54 = vpop.permute.xlu0 %53
  %57 = vset.pattern.permute.xlu0 0
  %58 = vperm.xlu0 %57, %v40
  %v59 = vpop.permute.xlu0 %58
  %vm61 = vcmask 130048
  %v63 = vsel %vm61, %v33, 0
  %v66 = vsel %vm61, %v34, 0
  %v69 = vsel %vm61, %v35, 0
  %v72 = vsel %vm61, %v36, 0
  %74 = vmatpush.msra.mxu0 0.0
  %75 = vmatpush.msra.mxu0 0.0
  %76 = vmatpush.msra.mxu0 0.0
  %77 = vmatpush.msra.mxu0 0.0
  %78 = vmatpush.msra.mxu0 0.0
  %79 = vmatpush.msra.mxu0 0.0
  %80 = vmatpush.msra.mxu0 0.0
  %81 = vmatpush.msra.mxu0 0.0
  %82 = vmatpush.msra.mxu0 0.0
  %83 = vmatpush.msra.mxu0 0.0
  %84 = vmatpush.msra.mxu0 0.0
  %85 = vmatpush.msra.mxu0 0.0
  %86 = vmatpush.msra.mxu0 0.0
  %87 = vmatpush.msra.mxu0 0.0
  %88 = vmatpush.msra.mxu0 %v31
  %89 = vmatpush.msra.mxu0 %v30
  %90 = vmatmul.f32.gmra.mxu0 %v63
  %v91 = vpop.f32.mrf.mxu0
  %v92 = vadd.f32 %v44, %v91
  %93 = vmatmul.f32.gmra.mxu0 %v66
  %v94 = vpop.f32.mrf.mxu0
  %v95 = vadd.f32 %v49, %v94
  %96 = vmatmul.f32.gmra.mxu0 %v69
  %v97 = vpop.f32.mrf.mxu0
  %v98 = vadd.f32 %v54, %v97
  %99 = vmatmul.f32.gmra.mxu0 %v72
  %v100 = vpop.f32.mrf.mxu0
  %v101 = vadd.f32 %v59, %v100
  %102 = vdwg.mxu0
  %v103 = vmul.f32 %v92, 0.01
  %v104 = vmul.f32 %v95, 0.01
  %v105 = vmul.f32 %v98, 0.01
  %v106 = vmul.f32 %v101, 0.01
  %v107 = vmax.f32 %v92, %v103
  %v108 = vmax.f32 %v95, %v104
  %v109 = vmax.f32 %v98, %v105
  %v110 = vmax.f32 %v101, %v106
  %v111 = vld [vmem:[%s3] sm:$0xff]
  %v112 = vld [vmem:[%s3 + $0x8] sm:$0xff]
  %v113 = vld [vmem:[%s3 + $0x10] sm:$0xff]
  %v114 = vld [vmem:[%s3 + $0x18] sm:$0xff]
  %v115 = vld [vmem:[%s4] sm:$0xff]
  %v116 = vld [vmem:[%s4 + $0x8] sm:$0xff]
  %v117 = vld [vmem:[%s4 + $0x10] sm:$0xff]
  %v118 = vld [vmem:[%s4 + $0x18] sm:$0xff]
  %vm119 = vcmask 31744
  %v121 = vsel %vm119, %v115, 0
  %v124 = vsel %vm119, %v116, 0
  %v127 = vsel %vm119, %v117, 0
  %v130 = vsel %vm119, %v118, 0
  %vm132 = vcmask 1043456
  %v134 = vsel %vm132, %v32, 0
  %136 = vmatpush.msra.mxu0 0.0
  %137 = vmatpush.msra.mxu0 0.0
  %138 = vmatpush.msra.mxu0 0.0
  %139 = vmatpush.msra.mxu0 0.0
  %140 = vmatpush.msra.mxu0 0.0
  %141 = vmatpush.msra.mxu0 0.0
  %142 = vmatpush.msra.mxu0 0.0
  %143 = vmatpush.msra.mxu0 0.0
  %144 = vmatpush.msra.mxu0 0.0
  %145 = vmatpush.msra.mxu0 0.0
  %146 = vmatpush.msra.mxu0 0.0
  %147 = vmatpush.msra.mxu0 0.0
  %148 = vmatpush.msra.mxu0 0.0
  %149 = vmatpush.msra.mxu0 0.0
  %150 = vmatpush.msra.mxu0 0.0
  %151 = vmatpush.msra.mxu0 %v134
  %152 = vmatmul.f32.gmra.mxu0 %v121
  %v153 = vpop.f32.mrf.mxu0
  %v154 = vadd.f32 0.0, %v153
  %155 = vmatmul.f32.gmra.mxu0 %v124
  %v156 = vpop.f32.mrf.mxu0
  %v157 = vadd.f32 0.0, %v156
  %158 = vmatmul.f32.gmra.mxu0 %v127
  %v159 = vpop.f32.mrf.mxu0
  %v160 = vadd.f32 0.0, %v159
  %161 = vmatmul.f32.gmra.mxu0 %v130
  %v162 = vpop.f32.mrf.mxu0
  %v163 = vadd.f32 0.0, %v162
  %164 = vdwg.mxu0
  %vm165 = vcmask 261120
  %v167 = vsel %vm165, %v111, 0
  %v170 = vsel %vm165, %v112, 0
  %v173 = vsel %vm165, %v113, 0
  %v176 = vsel %vm165, %v114, 0
  %178 = vmatpush.msra.mxu0 0.0
  %179 = vmatpush.msra.mxu0 0.0
  %180 = vmatpush.msra.mxu0 0.0
  %181 = vmatpush.msra.mxu0 0.0
  %182 = vmatpush.msra.mxu0 0.0
  %183 = vmatpush.msra.mxu0 0.0
  %184 = vmatpush.msra.mxu0 0.0
  %185 = vmatpush.msra.mxu0 0.0
  %186 = vmatpush.msra.mxu0 0.0
  %187 = vmatpush.msra.mxu0 0.0
  %188 = vmatpush.msra.mxu0 0.0
  %189 = vmatpush.msra.mxu0 0.0
  %190 = vmatpush.msra.mxu0 %v110
  %191 = vmatpush.msra.mxu0 %v109
  %192 = vmatpush.msra.mxu0 %v108
  %193 = vmatpush.msra.mxu0 %v107
  %194 = vmatmul.f32.gmra.mxu0 %v167
  %v195 = vpop.f32.mrf.mxu0
  %v196 = vadd.f32 %v154, %v195
  %197 = vmatmul.f32.gmra.mxu0 %v170
  %v198 = vpop.f32.mrf.mxu0
  %v199 = vadd.f32 %v157, %v198
  %200 = vmatmul.f32.gmra.mxu0 %v173
  %v201 = vpop.f32.mrf.mxu0
  %v202 = vadd.f32 %v160, %v201
  %203 = vmatmul.f32.gmra.mxu0 %v176
  %v204 = vpop.f32.mrf.mxu0
  %v205 = vadd.f32 %v163, %v204
  %206 = vdwg.mxu0
  %v207 = vld [vmem:[%s5] sm:$0xff]
  %v208 = vld [vmem:[%s5 + $0x8] sm:$0xff]
  %v209 = vld [vmem:[%s5 + $0x10] sm:$0xff]
  %v210 = vld [vmem:[%s5 + $0x18] sm:$0xff]
  %212 = vset.pattern.permute.xlu0 0
  %213 = vperm.xlu0 %212, %v207
  %v214 = vpop.permute.xlu0 %213
  %217 = vset.pattern.permute.xlu0 0
  %218 = vperm.xlu0 %217, %v208
  %v219 = vpop.permute.xlu0 %218
  %222 = vset.pattern.permute.xlu0 0
  %223 = vperm.xlu0 %222, %v209
  %v224 = vpop.permute.xlu0 %223
  %227 = vset.pattern.permute.xlu0 0
  %228 = vperm.xlu0 %227, %v210
  %v229 = vpop.permute.xlu0 %228
  %v231 = vadd.f32 %v196, %v214
  %v232 = vadd.f32 %v199, %v219
  %v233 = vadd.f32 %v202, %v224
  %v234 = vadd.f32 %v205, %v229
  %v235 = vmul.f32 %v231, 0.01
  %v236 = vmul.f32 %v232, 0.01
  %v237 = vmul.f32 %v233, 0.01
  %v238 = vmul.f32 %v234, 0.01
  %v239 = vmax.f32 %v231, %v235
  %v240 = vmax.f32 %v232, %v236
  %v241 = vmax.f32 %v233, %v237
  %v242 = vmax.f32 %v234, %v238
  %v243 = vld [vmem:[%s6] sm:$0xff]
  %v244 = vld [vmem:[%s6 + $0x8] sm:$0xff]
  %v245 = vld [vmem:[%s6 + $0x10] sm:$0xff]
  %v246 = vld [vmem:[%s6 + $0x18] sm:$0xff]
  %248 = vset.pattern.permute.xlu0 0
  %249 = vperm.xlu0 %248, %v243
  %v250 = vpop.permute.xlu0 %249
  %253 = vset.pattern.permute.xlu0 0
  %254 = vperm.xlu0 %253, %v244
  %v255 = vpop.permute.xlu0 %254
  %258 = vset.pattern.permute.xlu0 0
  %259 = vperm.xlu0 %258, %v245
  %v260 = vpop.permute.xlu0 %259
  %263 = vset.pattern.permute.xlu0 0
  %264 = vperm.xlu0 %263, %v246
  %v265 = vpop.permute.xlu0 %264
  %v267 = vmul.f32 %v239, %v250
  %v268 = vmul.f32 %v240, %v255
  %v269 = vmul.f32 %v241, %v260
  %v270 = vmul.f32 %v242, %v265
  %v271 = vadd.f32 %v267, %v268
  %v272 = vadd.f32 %v271, %v269
  %v273 = vadd.f32 %v272, %v270
  %v274 = vrot.slane %v273, 4
  %v275 = vadd.f32 %v273, %v274
  %v276 = vrot.slane %v275, 2
  %v277 = vadd.f32 %v275, %v276
  %v278 = vrot.slane %v277, 1
  %v279 = vadd.f32 %v277, %v278
  %s280 = sld [smem:[#allocation2]]
  %v281 = vstv %s280
  %v282 = vadd.f32 %v279, %v281
  %283 = vst [vmem:[%s8] sm:$0x1] %v282
  // Predicated region
  $region34: #{fc_q_forward.1} parent=0 // pred_check
    _
  $region35: #{fc_q_forward.1} parent=0 // pred_check_branch
    %285 = sbr.rel (0) target = $region37
  $region36: #{fc_q_forward.1} parent=0 // pred_region
    _
  $region37: #{fc_q_forward.1} parent=0 // pred_fallthru
    _
  // Predicated region
  $region38: #{fc_q_forward.1} parent=0 // pred_check
    _
  $region39: #{fc_q_forward.1} parent=0 // pred_check_branch
    %287 = sbr.rel (0) target = $region41
  $region40: #{fc_q_forward.1} parent=0 // pred_region
    _
  $region41: #{fc_q_forward.1} parent=0 // pred_fallthru
    _

</llo_original>
